<compile_context>
chip_gen: v5e
topology: v5e:2x2
jax: 0.10.0
libtpu: 0.0.40
codegen_flags: <defaults>
</compile_context>

<pallas_src>
import functools

import jax
import jax.numpy as jnp
from jax.experimental import pallas as pl
from jax.experimental.pallas import tpu as pltpu


def _grad_loss_kernel(s_ref, out_ref, prev_ref, *, penalty, W, HW, TD):
    # s_ref   : (TB, TD, HW) input tile (native dtype), HW = H*W (lane axis)
    # out_ref : (1, 3, HW) f32 per-lane partial sums for this batch block,
    #           resident across the depth axis. rows: 0 = dx(H), 1 = dy(D), 2 = dz(W)
    # prev_ref: (TB, 1, HW) VMEM carry — last depth plane of the previous tile
    d = pl.program_id(1)

    @pl.when(d == 0)
    def _init():
        out_ref[...] = jnp.zeros_like(out_ref)

    x = s_ref[...]                       # native dtype; differences taken here

    def reduce_diff(delta, mask=None):
        # Upcast only at the point of squaring / accumulating (f32 accumulate).
        if penalty == 'l2':
            v = delta.astype(jnp.float32)
            v = v * v                    # no redundant abs on the l2 path
        else:                            # torch falls back to plain abs (l1)
            v = jnp.abs(delta).astype(jnp.float32)
        if mask is not None:
            v = jnp.where(mask, v, 0.0)
        v = jnp.sum(v, axis=0, keepdims=True)   # (1, td', HW)
        v = jnp.sum(v, axis=1, keepdims=True)   # (1, 1, HW) per-lane partial
        return v

    if HW % 128 == 0:
        # Lane-aligned: XLU rotations + masks (no slice relayout copies).
        lane = jax.lax.broadcasted_iota(jnp.int32, (1, 1, HW), 2)

        def rolled_pair(step):
            # Rotate so each lane sees its neighbour `step` positions ahead.
            # The lane-index vector is rotated by the same op, so the mask can
            # pick exactly the lanes whose partner index differs by +/- step
            # (wrap lanes are excluded automatically; squares/abs are
            # sign-invariant, so partner order does not matter).
            shift = (-step) % HW
            xs = pltpu.roll(x, shift=shift, axis=2)
            ls = pltpu.roll(lane, shift=shift, axis=2)
            return xs, ls - lane

        # H-difference (torch dim 3): partner is lane + W (same column, next row).
        x_h, dh = rolled_pair(W)
        mask_h = dh == W
        if (2 * W) % HW != 0:            # otherwise fwd/bwd coincide (H <= 2)
            mask_h = mask_h | (dh == -W)
        p_dx = reduce_diff(x_h - x, mask_h)

        # W-difference (torch dim 4): partner is lane + 1 within the same row.
        x_w, dw = rolled_pair(1)
        lw = lane % W
        mask_w = (dw == 1) & (lw != (W - 1))
        if 2 % HW != 0:
            mask_w = mask_w | ((dw == -1) & (lw != 0))
        p_dz = reduce_diff(x_w - x, mask_w)
    else:
        # Fallback for non-128-aligned H*W: masked shifted slices (correct,
        # slightly slower — relayout copies).
        p_dx = reduce_diff(x[:, :, W:] - x[:, :, :HW - W])
        lane1 = jax.lax.broadcasted_iota(jnp.int32, (1, 1, HW - 1), 2)
        p_dz = reduce_diff(x[:, :, 1:] - x[:, :, :HW - 1],
                           (lane1 % W) != (W - 1))

    out_ref[:, 0:1, :] += p_dx
    out_ref[:, 2:3, :] += p_dz

    # D-difference (torch dim 2): pairs inside this depth tile ...
    if TD > 1:
        out_ref[:, 1:2, :] += reduce_diff(x[:, 1:, :] - x[:, :-1, :])

    # ... plus the pair straddling the previous depth tile (halo carry).
    @pl.when(d > 0)
    def _boundary():
        out_ref[:, 1:2, :] += reduce_diff(x[:, 0:1, :] - prev_ref[...])

    # Carry this tile's last depth plane for the next depth step.
    prev_ref[...] = x[:, TD - 1:TD, :]


def gradient_loss(s, penalty='l2', *, tb=None, td=None,
                  vmem_limit_bytes=64 * 1024 * 1024):
    """JAX/Pallas equivalent of the PyTorch gradient_loss.forward."""
    N, C, D, H, W = s.shape
    B = N * C
    HW = H * W
    itemsize = jnp.dtype(s.dtype).itemsize
    s3 = s.reshape(B, D, HW)             # lane-dense view (contiguous reshape)

    # ---- tile selection (~2 MiB per input block; double-buffered by Pallas) ----
    target = 2 * 1024 * 1024
    if td is None:
        plane = HW * itemsize
        if D * plane <= target:
            td = D                        # whole depth fits comfortably
        else:
            td = D
            for cand in range(8, D, 8):   # largest aligned divisor that fits
                if D % cand == 0 and cand * plane <= target:
                    td = cand
    td = int(td)
    if D % td != 0 or not (td == D or td % 8 == 0):
        raise ValueError(f"td={td} must divide D={D} and be a multiple of 8 "
                         "(or equal to D)")
    if tb is None:
        tb = max(1, min(B, target // max(td * HW * itemsize, 1)))
    tb = int(tb)

    NB = -(-B // tb)
    B_pad = NB * tb
    if B_pad != B:
        # Zero-padded volumes contribute 0 to every difference; the mean
        # divisors below use the true B, so the result is unchanged.
        s3 = jnp.pad(s3, ((0, B_pad - B), (0, 0), (0, 0)))
    ND = D // td

    out = pl.pallas_call(
        functools.partial(_grad_loss_kernel, penalty=penalty, W=W, HW=HW, TD=td),
        out_shape=jax.ShapeDtypeStruct((NB, 3, HW), jnp.float32),
        grid_spec=pltpu.PrefetchScalarGridSpec(
            num_scalar_prefetch=0,
            grid=(NB, ND),                               # depth axis innermost
            in_specs=[pl.BlockSpec((tb, td, HW), lambda b, d: (b, d, 0))],
            out_specs=pl.BlockSpec((1, 3, HW), lambda b, d: (b, 0, 0)),
            scratch_shapes=[pltpu.VMEM((tb, 1, HW), s.dtype)],
        ),
        compiler_params=pltpu.CompilerParams(
            # batch axis parallel (both TCs on v7x); depth axis carries the halo.
            dimension_semantics=("parallel", "arbitrary"),
            # NOTE: on v7x (64 MiB physical VMEM) re-derive tiles / lower this.
            vmem_limit_bytes=vmem_limit_bytes,
        ),
    )(s3)

    # Final cross-lane / cross-block reduction and torch.mean divisors.
    sums = jnp.sum(out, axis=(0, 2))      # (3,): [dx(H), dy(D), dz(W)]
    n_dx = B * D * (H - 1) * W
    n_dy = B * (D - 1) * H * W
    n_dz = B * D * H * (W - 1)
    d = sums[0] / n_dx + sums[1] / n_dy + sums[2] / n_dz
    return d / 3.0


def _reference(s, penalty='l2'):
    s = s.astype(jnp.float32)
    dy = jnp.abs(s[:, :, 1:, :, :] - s[:, :, :-1, :, :])
    dx = jnp.abs(s[:, :, :, 1:, :] - s[:, :, :, :-1, :])
    dz = jnp.abs(s[:, :, :, :, 1:] - s[:, :, :, :, :-1])
    if penalty == 'l2':
        dy = dy * dy
        dx = dx * dx
        dz = dz * dz
    return (jnp.mean(dx) + jnp.mean(dy) + jnp.mean(dz)) / 3.0


if __name__ == "__main__":
    key = jax.random.PRNGKey(0)
    # (N, C, D, H, W): small, but chosen so both grid axes, the depth-halo
    # carry and the batch-padding paths are exercised.
    s = jax.random.normal(key, (2, 3, 16, 16, 16), dtype=jnp.float32)

    # l2: 2 batch blocks x 2 depth blocks -> exercises the halo carry.
    out_l2 = jax.block_until_ready(gradient_loss(s, penalty='l2', tb=3, td=8))
    ref_l2 = _reference(s, penalty='l2')
    assert jnp.allclose(out_l2, ref_l2, rtol=1e-4, atol=1e-6), (out_l2, ref_l2)

    # l1: tb=4 forces batch padding (B=6 -> 8); single depth block.
    out_l1 = jax.block_until_ready(gradient_loss(s, penalty='l1', tb=4, td=16))
    ref_l1 = _reference(s, penalty='l1')
    assert jnp.allclose(out_l1, ref_l1, rtol=1e-4, atol=1e-6), (out_l1, ref_l1)

    print("KERNEL_OK")
</pallas_src>

<mosaic_0001>
module attributes {stable_mosaic.version = 11 : i64} {
  func.func @_grad_loss_kernel(%arg0: i32, %arg1: i32, %arg2: memref<3x8x256xf32, #tpu.memory_space<vmem>>, %arg3: memref<1x3x256xf32, #tpu.memory_space<vmem>>, %arg4: memref<3x1x256xf32, #tpu.memory_space<vmem>>) attributes {dimension_semantics = [#tpu.dimension_semantics<parallel>, #tpu.dimension_semantics<arbitrary>], iteration_bounds = array<i64: 2, 2>, scalar_prefetch = 0 : i64, scratch_operands = 1 : i64, tpu.core_type = #tpu.core_type<tc>, window_params = [{transform_indices = @transform_0, window_bounds = array<i64: 3, 8, 256>}, {transform_indices = @transform_1, window_bounds = array<i64: 1, 3, 256>}]} {
    %c0_i32 = arith.constant 0 : i32
    %0 = arith.cmpi eq, %arg1, %c0_i32 : i32
    %1 = arith.extui %0 : i1 to i32
    %c0_i32_0 = arith.constant 0 : i32
    %2 = arith.cmpi ne, %1, %c0_i32_0 : i32
    scf.if %2 {
      %cst_40 = arith.constant 0.000000e+00 : f32
      %85 = vector.broadcast %cst_40 : f32 to vector<1x3x256xf32>
      %c0_41 = arith.constant 0 : index
      %c0_42 = arith.constant 0 : index
      %c0_43 = arith.constant 0 : index
      %86 = vector.load %arg3[%c0_41, %c0_42, %c0_43] : memref<1x3x256xf32, #tpu.memory_space<vmem>>, vector<1x3x256xf32>
      tpu.vector_store %arg3[%c0_41, %c0_42, %c0_43], %85 {strides = array<i32>} : memref<1x3x256xf32, #tpu.memory_space<vmem>>, vector<1x3x256xf32>,
    } else {
    }
    %c0 = arith.constant 0 : index
    %c0_1 = arith.constant 0 : index
    %c0_2 = arith.constant 0 : index
    %3 = vector.load %arg2[%c0, %c0_1, %c0_2] : memref<3x8x256xf32, #tpu.memory_space<vmem>>, vector<3x8x256xf32>
    %4 = tpu.iota {dimensions = array<i32: 2>} : vector<1x1x256xi32>
    %c240_i32 = arith.constant 240 : i32
    %5 = tpu.dynamic_rotate %3 by %c240_i32 dim 2 : vector<3x8x256xf32>, i32 -> vector<3x8x256xf32>
    %c240_i32_3 = arith.constant 240 : i32
    %6 = tpu.dynamic_rotate %4 by %c240_i32_3 dim 2 : vector<1x1x256xi32>, i32 -> vector<1x1x256xi32>
    %7 = arith.subi %6, %4 : vector<1x1x256xi32>
    %c16_i32 = arith.constant 16 : i32
    %8 = vector.broadcast %c16_i32 : i32 to vector<1x1x256xi32>
    %9 = arith.cmpi eq, %7, %8 : vector<1x1x256xi32>
    %c-16_i32 = arith.constant -16 : i32
    %10 = vector.broadcast %c-16_i32 : i32 to vector<1x1x256xi32>
    %11 = arith.cmpi eq, %7, %10 : vector<1x1x256xi32>
    %12 = arith.ori %9, %11 : vector<1x1x256xi1>
    %13 = arith.subf %5, %3 : vector<3x8x256xf32>
    %14 = arith.mulf %13, %13 : vector<3x8x256xf32>
    %cst = arith.constant 0.000000e+00 : f32
    %15 = vector.shape_cast %12 : vector<1x1x256xi1> to vector<1x1x256xi1>
    %16 = vector.broadcast %15 : vector<1x1x256xi1> to vector<3x8x256xi1>
    %17 = vector.broadcast %cst : f32 to vector<3x8x256xf32>
    %18 = arith.select %16, %14, %17 : vector<3x8x256xi1>, vector<3x8x256xf32>
    %cst_4 = arith.constant dense<0.000000e+00> : vector<8x256xf32>
    %19 = vector.multi_reduction <add>, %18, %cst_4 [0] : vector<3x8x256xf32> to vector<8x256xf32>
    %20 = vector.shape_cast %19 : vector<8x256xf32> to vector<1x8x256xf32>
    %cst_5 = arith.constant dense<0.000000e+00> : vector<1x256xf32>
    %21 = vector.multi_reduction <add>, %20, %cst_5 [1] : vector<1x8x256xf32> to vector<1x256xf32>
    %22 = vector.shape_cast %21 : vector<1x256xf32> to vector<1x1x256xf32>
    %c255_i32 = arith.constant 255 : i32
    %23 = tpu.dynamic_rotate %3 by %c255_i32 dim 2 : vector<3x8x256xf32>, i32 -> vector<3x8x256xf32>
    %c255_i32_6 = arith.constant 255 : i32
    %24 = tpu.dynamic_rotate %4 by %c255_i32_6 dim 2 : vector<1x1x256xi32>, i32 -> vector<1x1x256xi32>
    %25 = arith.subi %24, %4 : vector<1x1x256xi32>
    %c16_i32_7 = arith.constant 16 : i32
    %c0_i32_8 = arith.constant 0 : i32
    %26 = arith.cmpi eq, %c16_i32_7, %c0_i32_8 : i32
    %c1_i32 = arith.constant 1 : i32
    %27 = arith.select %26, %c1_i32, %c16_i32_7 : i32
    %28 = vector.broadcast %27 : i32 to vector<1x1x256xi32>
    %29 = arith.remsi %4, %28 : vector<1x1x256xi32>
    %c0_i32_9 = arith.constant 0 : i32
    %30 = vector.broadcast %c0_i32_9 : i32 to vector<1x1x256xi32>
    %31 = arith.cmpi ne, %29, %30 : vector<1x1x256xi32>
    %c0_i32_10 = arith.constant 0 : i32
    %32 = vector.broadcast %c0_i32_10 : i32 to vector<1x1x256xi32>
    %33 = arith.cmpi slt, %29, %32 : vector<1x1x256xi32>
    %c0_i32_11 = arith.constant 0 : i32
    %34 = arith.cmpi slt, %27, %c0_i32_11 : i32
    %35 = vector.broadcast %34 : i1 to vector<1x1x256xi1>
    %36 = vector.broadcast %35 : vector<1x1x256xi1> to vector<1x1x256xi1>
    %37 = arith.xori %33, %36 : vector<1x1x256xi1>
    %38 = arith.andi %37, %31 : vector<1x1x256xi1>
    %39 = vector.broadcast %27 : i32 to vector<1x1x256xi32>
    %40 = arith.addi %29, %39 : vector<1x1x256xi32>
    %41 = arith.select %38, %40, %29 : vector<1x1x256xi1>, vector<1x1x256xi32>
    %c1_i32_12 = arith.constant 1 : i32
    %42 = vector.broadcast %c1_i32_12 : i32 to vector<1x1x256xi32>
    %43 = arith.cmpi eq, %25, %42 : vector<1x1x256xi32>
    %c15_i32 = arith.constant 15 : i32
    %44 = vector.broadcast %c15_i32 : i32 to vector<1x1x256xi32>
    %45 = arith.cmpi ne, %41, %44 : vector<1x1x256xi32>
    %46 = arith.andi %43, %45 : vector<1x1x256xi1>
    %c-1_i32 = arith.constant -1 : i32
    %47 = vector.broadcast %c-1_i32 : i32 to vector<1x1x256xi32>
    %48 = arith.cmpi eq, %25, %47 : vector<1x1x256xi32>
    %c0_i32_13 = arith.constant 0 : i32
    %49 = vector.broadcast %c0_i32_13 : i32 to vector<1x1x256xi32>
    %50 = arith.cmpi ne, %41, %49 : vector<1x1x256xi32>
    %51 = arith.andi %48, %50 : vector<1x1x256xi1>
    %52 = arith.ori %46, %51 : vector<1x1x256xi1>
    %53 = arith.subf %23, %3 : vector<3x8x256xf32>
    %54 = arith.mulf %53, %53 : vector<3x8x256xf32>
    %cst_14 = arith.constant 0.000000e+00 : f32
    %55 = vector.shape_cast %52 : vector<1x1x256xi1> to vector<1x1x256xi1>
    %56 = vector.broadcast %55 : vector<1x1x256xi1> to vector<3x8x256xi1>
    %57 = vector.broadcast %cst_14 : f32 to vector<3x8x256xf32>
    %58 = arith.select %56, %54, %57 : vector<3x8x256xi1>, vector<3x8x256xf32>
    %cst_15 = arith.constant dense<0.000000e+00> : vector<8x256xf32>
    %59 = vector.multi_reduction <add>, %58, %cst_15 [0] : vector<3x8x256xf32> to vector<8x256xf32>
    %60 = vector.shape_cast %59 : vector<8x256xf32> to vector<1x8x256xf32>
    %cst_16 = arith.constant dense<0.000000e+00> : vector<1x256xf32>
    %61 = vector.multi_reduction <add>, %60, %cst_16 [1] : vector<1x8x256xf32> to vector<1x256xf32>
    %62 = vector.shape_cast %61 : vector<1x256xf32> to vector<1x1x256xf32>
    %c0_17 = arith.constant 0 : index
    %c0_18 = arith.constant 0 : index
    %c0_19 = arith.constant 0 : index
    %63 = vector.load %arg3[%c0_17, %c0_18, %c0_19] : memref<1x3x256xf32, #tpu.memory_space<vmem>>, vector<1x1x256xf32>
    %64 = arith.addf %63, %22 : vector<1x1x256xf32>
    %c0_20 = arith.constant 0 : index
    %c0_21 = arith.constant 0 : index
    %c0_22 = arith.constant 0 : index
    %65 = vector.load %arg3[%c0_20, %c0_21, %c0_22] : memref<1x3x256xf32, #tpu.memory_space<vmem>>, vector<1x1x256xf32>
    tpu.vector_store %arg3[%c0_20, %c0_21, %c0_22], %64 {strides = array<i32>} : memref<1x3x256xf32, #tpu.memory_space<vmem>>, vector<1x1x256xf32>,
    %c0_23 = arith.constant 0 : index
    %c2 = arith.constant 2 : index
    %c0_24 = arith.constant 0 : index
    %66 = vector.load %arg3[%c0_23, %c2, %c0_24] : memref<1x3x256xf32, #tpu.memory_space<vmem>>, vector<1x1x256xf32>
    %67 = arith.addf %66, %62 : vector<1x1x256xf32>
    %c0_25 = arith.constant 0 : index
    %c2_26 = arith.constant 2 : index
    %c0_27 = arith.constant 0 : index
    %68 = vector.load %arg3[%c0_25, %c2_26, %c0_27] : memref<1x3x256xf32, #tpu.memory_space<vmem>>, vector<1x1x256xf32>
    tpu.vector_store %arg3[%c0_25, %c2_26, %c0_27], %67 {strides = array<i32>} : memref<1x3x256xf32, #tpu.memory_space<vmem>>, vector<1x1x256xf32>,
    %c0_28 = arith.constant 0 : index
    %c1 = arith.constant 1 : index
    %c0_29 = arith.constant 0 : index
    %69 = vector.load %arg3[%c0_28, %c1, %c0_29] : memref<1x3x256xf32, #tpu.memory_space<vmem>>, vector<1x1x256xf32>
    %70 = vector.extract_strided_slice %3 {offsets = [0, 1, 0], sizes = [3, 7, 256], strides = [1, 1, 1]} : vector<3x8x256xf32> to vector<3x7x256xf32>
    %71 = vector.extract_strided_slice %3 {offsets = [0, 0, 0], sizes = [3, 7, 256], strides = [1, 1, 1]} : vector<3x8x256xf32> to vector<3x7x256xf32>
    %72 = arith.subf %70, %71 : vector<3x7x256xf32>
    %73 = arith.mulf %72, %72 : vector<3x7x256xf32>
    %cst_30 = arith.constant dense<0.000000e+00> : vector<7x256xf32>
    %74 = vector.multi_reduction <add>, %73, %cst_30 [0] : vector<3x7x256xf32> to vector<7x256xf32>
    %75 = vector.shape_cast %74 : vector<7x256xf32> to vector<1x7x256xf32>
    %cst_31 = arith.constant dense<0.000000e+00> : vector<1x256xf32>
    %76 = vector.multi_reduction <add>, %75, %cst_31 [1] : vector<1x7x256xf32> to vector<1x256xf32>
    %77 = vector.shape_cast %76 : vector<1x256xf32> to vector<1x1x256xf32>
    %78 = arith.addf %69, %77 : vector<1x1x256xf32>
    %c0_32 = arith.constant 0 : index
    %c1_33 = arith.constant 1 : index
    %c0_34 = arith.constant 0 : index
    %79 = vector.load %arg3[%c0_32, %c1_33, %c0_34] : memref<1x3x256xf32, #tpu.memory_space<vmem>>, vector<1x1x256xf32>
    tpu.vector_store %arg3[%c0_32, %c1_33, %c0_34], %78 {strides = array<i32>} : memref<1x3x256xf32, #tpu.memory_space<vmem>>, vector<1x1x256xf32>,
    %c0_i32_35 = arith.constant 0 : i32
    %80 = arith.cmpi sgt, %arg1, %c0_i32_35 : i32
    %81 = arith.extui %80 : i1 to i32
    %c0_i32_36 = arith.constant 0 : i32
    %82 = arith.cmpi ne, %81, %c0_i32_36 : i32
    scf.if %82 {
      %c0_40 = arith.constant 0 : index
      %c1_41 = arith.constant 1 : index
      %c0_42 = arith.constant 0 : index
      %85 = vector.load %arg3[%c0_40, %c1_41, %c0_42] : memref<1x3x256xf32, #tpu.memory_space<vmem>>, vector<1x1x256xf32>
      %86 = vector.extract_strided_slice %3 {offsets = [0, 0, 0], sizes = [3, 1, 256], strides = [1, 1, 1]} : vector<3x8x256xf32> to vector<3x1x256xf32>
      %c0_43 = arith.constant 0 : index
      %c0_44 = arith.constant 0 : index
      %c0_45 = arith.constant 0 : index
      %87 = vector.load %arg4[%c0_43, %c0_44, %c0_45] : memref<3x1x256xf32, #tpu.memory_space<vmem>>, vector<3x1x256xf32>
      %88 = arith.subf %86, %87 : vector<3x1x256xf32>
      %89 = arith.mulf %88, %88 : vector<3x1x256xf32>
      %cst_46 = arith.constant dense<0.000000e+00> : vector<1x256xf32>
      %90 = vector.multi_reduction <add>, %89, %cst_46 [0] : vector<3x1x256xf32> to vector<1x256xf32>
      %91 = vector.shape_cast %90 : vector<1x256xf32> to vector<1x1x256xf32>
      %cst_47 = arith.constant dense<0.000000e+00> : vector<1x256xf32>
      %92 = vector.multi_reduction <add>, %91, %cst_47 [1] : vector<1x1x256xf32> to vector<1x256xf32>
      %93 = vector.shape_cast %92 : vector<1x256xf32> to vector<1x1x256xf32>
      %94 = arith.addf %85, %93 : vector<1x1x256xf32>
      %c0_48 = arith.constant 0 : index
      %c1_49 = arith.constant 1 : index
      %c0_50 = arith.constant 0 : index
      %95 = vector.load %arg3[%c0_48, %c1_49, %c0_50] : memref<1x3x256xf32, #tpu.memory_space<vmem>>, vector<1x1x256xf32>
      tpu.vector_store %arg3[%c0_48, %c1_49, %c0_50], %94 {strides = array<i32>} : memref<1x3x256xf32, #tpu.memory_space<vmem>>, vector<1x1x256xf32>,
    } else {
    }
    %83 = vector.extract_strided_slice %3 {offsets = [0, 7, 0], sizes = [3, 1, 256], strides = [1, 1, 1]} : vector<3x8x256xf32> to vector<3x1x256xf32>
    %c0_37 = arith.constant 0 : index
    %c0_38 = arith.constant 0 : index
    %c0_39 = arith.constant 0 : index
    %84 = vector.load %arg4[%c0_37, %c0_38, %c0_39] : memref<3x1x256xf32, #tpu.memory_space<vmem>>, vector<3x1x256xf32>
    tpu.vector_store %arg4[%c0_37, %c0_38, %c0_39], %83 {strides = array<i32>} : memref<3x1x256xf32, #tpu.memory_space<vmem>>, vector<3x1x256xf32>,
    return
  }
  func.func @transform_0(%arg0: i32, %arg1: i32) -> (i32, i32, i32) {
    %c0_i32 = arith.constant 0 : i32
    %c0_i32_0 = arith.constant 0 : i32
    return %arg0, %arg1, %c0_i32 : i32, i32, i32
  }
  func.func @transform_1(%arg0: i32, %arg1: i32) -> (i32, i32, i32) {
    %c0_i32 = arith.constant 0 : i32
    %c0_i32_0 = arith.constant 0 : i32
    %c0_i32_1 = arith.constant 0 : i32
    return %arg0, %c0_i32, %c0_i32_0 : i32, i32, i32
  }
}

</mosaic_0001>

<llo_original>
// kernel: tpu_custom_call.1
$region0: #{tpu_custom_call.1}
  #allocation0 [shape = 'u32[]', space=smem, size = 0x4, offset = 0x4, fixed_abs, tag = 'smem constant byte address 0x4 - core index']
  #allocation1 [shape = 'u32[72,128]{1,0:T(1,128)}', space=vmem, size = 0x9000, scoped, tag = 'internal scratch']
  #allocation2 [shape = 'f32[3,1,256]{2,1,0:T(1,128)}', space=vmem, size = 0xc00, scoped, tag = 'scratch operand']
  %s0 = inlined_call_operand.hbm [shape: f32[6,16,256], index: 0, kind: input, shape index: {}]
  %s1 = inlined_call_operand.vmem [shape: f32[2,3,256], index: 1, kind: output, shape index: {}]
  %s2 = sld [smem:[#allocation0]]
  $region49: #{tpu_custom_call.1} parent=0
    _
  %s4 = ssub.s32 1, %s2
  %s5 = scalar_select 0, %s4, %s2
  $region1: #{tpu_custom_call.1} parent=0
    #allocation3 [shape = 'u8[49152]{0}', space=vmem, size = 0xc000, scoped, tag = 'input window, operand 0']
    #allocation4 [shape = 's32[2]{0}', space=sflag, size = 0x8, scoped, tag = 'scoped memory for tpu_custom_call.1']
    %6 = vsyncpa [#allocation4], 0
    %s7 = scalar_lea.sflag [#allocation4], 1
    %8 = vsyncpa %s7, 0
    loop: start=0, step=1, limit=6
    $region2: #{tpu_custom_call.1} parent=1 // loop_pre_header
      _
    $region3: #{tpu_custom_call.1} parent=1 // loop_header
      %s10 = sphi 0, %s14
      %p11 = scmp.ge.s32.totalorder %s10, 6
      %s17 = sphi 0, %s29
      %s18 = sphi 0, %s25
      %s19 = sphi 0, %s17
      %s20 = sphi 0, %s18
      %s21 = sphi 0, %s19
      %s22 = sphi 0, %s20
      %s34 = sphi 0, %s36
      %s37 = sphi 0, %s34
      %s38 = sphi 0, %s37
      %s54 = sphi 0, %s38
      %s60 = sphi 0, %s62
      %s63 = sphi 0, %s60
      %s64 = sphi 0, %s63
      %s80 = sphi 0, %s64
    $region4: #{tpu_custom_call.1} parent=1 // loop_header_branch
      %13 = sbr.rel (%p11) target = $region8
    $region5: #{tpu_custom_call.1} parent=1 // loop_body
      %s15 = ssub.s32 %s10, 1
      %s16 = ssub.s32 %s10, 2
      %s23 = sadd.s32 1, %s18
      %p24 = scmp.ge.s32.totalorder %s23, 2
      %s25 = scalar_select %p24, 0, %s23
      %s26 = sadd.s32 1, %s17
      %s27 = scalar_select %p24, %s26, %s17
      %p28 = scmp.ge.s32.totalorder %s27, 2
      %s29 = scalar_select %p28, 0, %s27
      %s30 = ssub.s32 %s17, %s29
      %s31 = ssub.s32 %s18, %s25
      %s32 = sor.u32 %s30, %s31
      %p33 = scmp.eq.s32.totalorder %s32, 0
      %s35 = sadd.s32 %s34, 1
      %s36 = scalar_select %p33, %s34, %s35
      %p39 = pneg %p33
      %p40 = scmp.eq.s32.totalorder %s10, 3
      %p41 = por %p39, %p40
      %p42 = scmp.ne.s32.totalorder %s34, %s37
      %p43 = scmp.eq.s32.totalorder %s10, 0
      %p44 = por %p42, %p43
      %p45 = scmp.ne.s32.totalorder %s34, %s37
      %p46 = scmp.eq.s32.totalorder %s15, 3
      %p47 = por %p45, %p46
      %p48 = scmp.ne.s32.totalorder %s37, %s38
      %p49 = scmp.eq.s32.totalorder %s15, 0
      %p50 = por %p48, %p49
      %p51 = scmp.ne.s32.totalorder %s37, %s38
      %p52 = scmp.eq.s32.totalorder %s16, 3
      %p53 = por %p51, %p52
      %p55 = scmp.ne.s32.totalorder %s38, %s54
      %p56 = scmp.eq.s32.totalorder %s16, 0
      %p57 = por %p55, %p56
      %s58 = ssub.s32 %s17, %s29
      %p59 = scmp.eq.s32.totalorder %s58, 0
      %s61 = sadd.s32 %s60, 1
      %s62 = scalar_select %p59, %s60, %s61
      %p65 = pneg %p59
      %p66 = scmp.eq.s32.totalorder %s10, 3
      %p67 = por %p65, %p66
      %p68 = scmp.ne.s32.totalorder %s60, %s63
      %p69 = scmp.eq.s32.totalorder %s10, 0
      %p70 = por %p68, %p69
      %p71 = scmp.ne.s32.totalorder %s60, %s63
      %p72 = scmp.eq.s32.totalorder %s15, 3
      %p73 = por %p71, %p72
      %p74 = scmp.ne.s32.totalorder %s63, %s64
      %p75 = scmp.eq.s32.totalorder %s15, 0
      %p76 = por %p74, %p75
      %p77 = scmp.ne.s32.totalorder %s63, %s64
      %p78 = scmp.eq.s32.totalorder %s16, 3
      %p79 = por %p77, %p78
      %p81 = scmp.ne.s32.totalorder %s64, %s80
      %p82 = scmp.eq.s32.totalorder %s16, 0
      %p83 = por %p81, %p82
      %p84 = scmp.le.s32.totalorder 1, %s10
      %p85 = scmp.lt.s32.totalorder %s10, 5
      %p86 = pnand %p84, %p85
      %p87 = pneg %p86
      // Predicated region
      $region9: #{tpu_custom_call.1} parent=5 // pred_check
        _
      $region10: #{tpu_custom_call.1} parent=5 // pred_check_branch
        %89 = sbr.rel (%p86) target = $region12
      $region11: #{tpu_custom_call.1} parent=5 // pred_region
        %s90 = ssub.s32 %s10, 1
      $region12: #{tpu_custom_call.1} parent=5 // pred_fallthru
        _
      %p91 = scmp.lt.s32.totalorder %s10, 4
      // Predicated region
      $region13: #{tpu_custom_call.1} parent=5 // pred_check
        %p92 = pneg %p91
      $region14: #{tpu_custom_call.1} parent=5 // pred_check_branch
        %94 = sbr.rel (%p92) target = $region16
      $region15: #{tpu_custom_call.1} parent=5 // pred_region
        // Predicated region
        $region17: #{tpu_custom_call.1} parent=15 // pred_check
          %p95 = pneg %p44
        $region18: #{tpu_custom_call.1} parent=15 // pred_check_branch
          %97 = sbr.rel (%p95) target = $region20
        $region19: #{tpu_custom_call.1} parent=15 // pred_region
          %s98 = sand.u32 %s34, 1
          %s99 = scalar_lea.sflag [#allocation4], %s98
          %s100 = sand.u32 %s34, 1
          %s101 = smul.addr %s100, 48
          %s102 = scalar_lea.vmem [#allocation3], %s101
          %s103 = smul.u32 3, %s17
          %105 = vsyncadd %s99, 0
          %s106 = smul.addr %s18, 2
          %s107 = smul.addr %s103, 4
          %s108 = sadd.s32 %s106, %s107
          %s109 = smul.addr %s108, 8
          %s110 = scalar_lea.hbm %s0, %s109
          %s111 = sshll.u32 %s110, 4
          %s112 = int_to_ptr.hbm [resolvable:$true] %s111
          %s113 = sshll.u32 %s102, 4
          %s114 = int_to_ptr.vmem [resolvable:$true] %s113
          %119 = dma.hbm_to_vmem [thread:$0]  %s112, 768, %s114, %s99, 512, 256, 16
        $region20: #{tpu_custom_call.1} parent=15 // pred_fallthru
          _
      $region16: #{tpu_custom_call.1} parent=5 // pred_fallthru
        _
      %p120 = scmp.le.s32.totalorder 1, %s10
      %p121 = scmp.lt.s32.totalorder %s10, 5
      %p122 = pnand %p120, %p121
      %p123 = pneg %p122
      // Predicated region
      $region21: #{tpu_custom_call.1} parent=5 // pred_check
        _
      $region22: #{tpu_custom_call.1} parent=5 // pred_check_branch
        %125 = sbr.rel (%p122) target = $region24
      $region23: #{tpu_custom_call.1} parent=5 // pred_region
        %s126 = ssub.s32 %s10, 1
        %s127 = sand.u32 %s37, 1
        %s128 = scalar_lea.sflag [#allocation4], %s127
        %s129 = sand.u32 %s37, 1
        %s130 = smul.addr %s129, 48
        %s131 = scalar_lea.vmem [#allocation3], %s130
        // Predicated region
        $region25: #{tpu_custom_call.1} parent=23 // pred_check
          %p132 = pneg %p50
        $region26: #{tpu_custom_call.1} parent=23 // pred_check_branch
          %134 = sbr.rel (%p132) target = $region28
        $region27: #{tpu_custom_call.1} parent=23 // pred_region
          %136 = dma.done %s128, 768
        $region28: #{tpu_custom_call.1} parent=23 // pred_fallthru
          _
        %s137 = sand.u32 %s37, 1
        %s138 = scalar_lea.sflag [#allocation4], %s137
        %s139 = sand.u32 %s37, 1
        %s140 = smul.addr %s139, 48
        %s141 = scalar_lea.vmem [#allocation3], %s140
        %p142 = pneg %p50
        %p143 = pneg %p47
        %p144 = pneg %p76
        %p145 = pneg %p73
        %p146 = scmp.lt.s32.totalorder %s19, 1
        %s147 = scalar_select %p146, %s19, 1
        %s148 = smul.addr %s147, 2
        %s149 = smul.addr %s148, 4
        %s150 = scalar_lea.vmem %s1, %s149
        %s151 = smul.u32 3, %s19
        %p152 = scmp.lt.s32.totalorder %s19, 1
        %s153 = scalar_select %p152, %s19, 1
        %s154 = smul.addr %s153, 2
        %s155 = smul.addr %s154, 4
        %s156 = scalar_lea.vmem %s1, %s155
        %p157 = scmp.eq.s32.totalorder %s20, 0
        // Predicated region
        $region29: #{tpu_custom_call.1} parent=23 // pred_check
          %p158 = pneg %p157
        $region30: #{tpu_custom_call.1} parent=23 // pred_check_branch
          %160 = sbr.rel (%p158) target = $region32
        $region31: #{tpu_custom_call.1} parent=23 // pred_region
          %161 = vst [vmem:[%s156] sm:$0x77] 0.0
        $region32: #{tpu_custom_call.1} parent=23 // pred_fallthru
          _
        %v162 = vld [vmem:[%s131] sm:$0xff]
        %v163 = vld [vmem:[%s131 + $0x8] sm:$0xff]
        %v164 = vld [vmem:[%s131 + $0x10] sm:$0xff]
        %v165 = vld [vmem:[%s131 + $0x18] sm:$0xff]
        %v166 = vld [vmem:[%s131 + $0x20] sm:$0xff]
        %v167 = vld [vmem:[%s131 + $0x28] sm:$0xff]
        %v168 = vlaneseq
        %v169 = vand.u32 %v168, 127
        %v170 = vadd.s32 %v169, 128
        %171 = vrot.lane.b32.xlu0 %v162, 112
        %v172 = vpop.permute.xlu0 %171
        %173 = vrot.lane.b32.xlu0 %v164, 112
        %v174 = vpop.permute.xlu0 %173
        %175 = vrot.lane.b32.xlu0 %v166, 112
        %v176 = vpop.permute.xlu0 %175
        %177 = vrot.lane.b32.xlu0 %v163, 112
        %v178 = vpop.permute.xlu0 %177
        %179 = vrot.lane.b32.xlu0 %v165, 112
        %v180 = vpop.permute.xlu0 %179
        %181 = vrot.lane.b32.xlu0 %v167, 112
        %v182 = vpop.permute.xlu0 %181
        %vm183 = vcmp.lt.s32.totalorder %v169, 112
        %v184 = vsel %vm183, %v172, %v178
        %v185 = vsel %vm183, %v174, %v180
        %v186 = vsel %vm183, %v176, %v182
        %v187 = vsel %vm183, %v178, %v172
        %v188 = vsel %vm183, %v180, %v174
        %v189 = vsel %vm183, %v182, %v176
        %190 = vrot.lane.b32.xlu0 %v169, 112
        %v191 = vpop.permute.xlu0 %190
        %192 = vrot.lane.b32.xlu0 %v170, 112
        %v193 = vpop.permute.xlu0 %192
        %v194 = vsel %vm183, %v191, %v193
        %v195 = vsel %vm183, %v193, %v191
        %v196 = vsub.s32 %v194, %v169
        %v197 = vsub.s32 %v195, %v170
        %vm198 = vcmp.eq.s32.totalorder %v196, 16
        %vm199 = vcmp.eq.s32.totalorder %v197, 16
        %vm200 = vcmp.eq.s32.totalorder %v196, 4294967280
        %vm201 = vcmp.eq.s32.totalorder %v197, 4294967280
        %vm202 = vmor %vm198, %vm200
        %vm203 = vmor %vm199, %vm201
        %v204 = vsub.f32 %v184, %v162
        %v205 = vsub.f32 %v187, %v163
        %v206 = vsub.f32 %v185, %v164
        %v207 = vsub.f32 %v188, %v165
        %v208 = vsub.f32 %v186, %v166
        %v209 = vsub.f32 %v189, %v167
        %v210 = vmul.f32 %v204, %v204
        %v211 = vmul.f32 %v205, %v205
        %v212 = vmul.f32 %v206, %v206
        %v213 = vmul.f32 %v207, %v207
        %v214 = vmul.f32 %v208, %v208
        %v215 = vmul.f32 %v209, %v209
        %v216 = vsel %vm202, 1, 0
        %v217 = vsel %vm203, 1, 0
        %v218 = vperm.slane %v216, 0
        %v219 = vperm.slane %v217, 0
        %vm220 = vcmp.eq.s32.totalorder %v218, 1
        %vm221 = vcmp.eq.s32.totalorder %v219, 1
        %v222 = vsel %vm220, %v210, 0.0
        %v223 = vsel %vm221, %v211, 0.0
        %v224 = vsel %vm220, %v212, 0.0
        %v225 = vsel %vm221, %v213, 0.0
        %v226 = vsel %vm220, %v214, 0.0
        %v227 = vsel %vm221, %v215, 0.0
        %v228 = vadd.f32 %v222, %v224
        %v229 = vadd.f32 %v228, %v226
        %v230 = vadd.f32 %v223, %v225
        %v231 = vadd.f32 %v230, %v227
        %v232 = vrot.slane %v229, 4
        %v233 = vadd.f32 %v229, %v232
        %v234 = vrot.slane %v233, 2
        %v235 = vadd.f32 %v233, %v234
        %v236 = vrot.slane %v235, 1
        %v237 = vadd.f32 %v235, %v236
        %v238 = vrot.slane %v231, 4
        %v239 = vadd.f32 %v231, %v238
        %v240 = vrot.slane %v239, 2
        %v241 = vadd.f32 %v239, %v240
        %v242 = vrot.slane %v241, 1
        %v243 = vadd.f32 %v241, %v242
        %244 = vrot.lane.b32.xlu0 %v162, 127
        %v245 = vpop.permute.xlu0 %244
        %246 = vrot.lane.b32.xlu0 %v164, 127
        %v247 = vpop.permute.xlu0 %246
        %248 = vrot.lane.b32.xlu0 %v166, 127
        %v249 = vpop.permute.xlu0 %248
        %250 = vrot.lane.b32.xlu0 %v163, 127
        %v251 = vpop.permute.xlu0 %250
        %252 = vrot.lane.b32.xlu0 %v165, 127
        %v253 = vpop.permute.xlu0 %252
        %254 = vrot.lane.b32.xlu0 %v167, 127
        %v255 = vpop.permute.xlu0 %254
        %vm256 = vcmp.lt.s32.totalorder %v169, 127
        %v257 = vsel %vm256, %v245, %v251
        %v258 = vsel %vm256, %v247, %v253
        %v259 = vsel %vm256, %v249, %v255
        %v260 = vsel %vm256, %v251, %v245
        %v261 = vsel %vm256, %v253, %v247
        %v262 = vsel %vm256, %v255, %v249
        %263 = vrot.lane.b32.xlu0 %v169, 127
        %v264 = vpop.permute.xlu0 %263
        %265 = vrot.lane.b32.xlu0 %v170, 127
        %v266 = vpop.permute.xlu0 %265
        %v267 = vsel %vm256, %v264, %v266
        %v268 = vsel %vm256, %v266, %v264
        %v269 = vsub.s32 %v267, %v169
        %v270 = vsub.s32 %v268, %v170
        %vm271 = vcmp.lt.s32.totalorder %v169, 0
        %v272 = vsub.s32 0, %v169
        %v273 = vsel %vm271, %v272, %v169
        %v274 = vshrl.u32 %v273, 4
        %v275 = vand.u32 %v273, 15
        %v276 = vsub.s32 0, %v275
        %v277 = vsel %vm271, %v276, %v275
        %vm278 = vcmp.lt.s32.totalorder %v170, 0
        %v279 = vsub.s32 0, %v170
        %v280 = vsel %vm278, %v279, %v170
        %v281 = vshrl.u32 %v280, 4
        %v282 = vand.u32 %v280, 15
        %v283 = vsub.s32 0, %v282
        %v284 = vsel %vm278, %v283, %v282
        %vm285 = vcmp.ne.s32.totalorder %v277, 0
        %vm286 = vcmp.ne.s32.totalorder %v284, 0
        %vm287 = vcmp.lt.s32.totalorder %v277, 0
        %vm288 = vcmp.lt.s32.totalorder %v284, 0
        %vm289 = vmand %vm287, %vm285
        %vm290 = vmand %vm288, %vm286
        %v291 = vadd.s32 %v277, 16
        %v292 = vadd.s32 %v284, 16
        %v293 = vsel %vm289, %v291, %v277
        %v294 = vsel %vm290, %v292, %v284
        %vm295 = vcmp.eq.s32.totalorder %v269, 1
        %vm296 = vcmp.eq.s32.totalorder %v270, 1
        %vm297 = vcmp.ne.s32.totalorder %v293, 15
        %vm298 = vcmp.ne.s32.totalorder %v294, 15
        %vm299 = vmand %vm295, %vm297
        %vm300 = vmand %vm296, %vm298
        %vm301 = vcmp.eq.s32.totalorder %v269, 4294967295
        %vm302 = vcmp.eq.s32.totalorder %v270, 4294967295
        %vm303 = vcmp.ne.s32.totalorder %v293, 0
        %vm304 = vcmp.ne.s32.totalorder %v294, 0
        %vm305 = vmand %vm301, %vm303
        %vm306 = vmand %vm302, %vm304
        %vm307 = vmor %vm299, %vm305
        %vm308 = vmor %vm300, %vm306
        %v309 = vsub.f32 %v257, %v162
        %v310 = vsub.f32 %v260, %v163
        %v311 = vsub.f32 %v258, %v164
        %v312 = vsub.f32 %v261, %v165
        %v313 = vsub.f32 %v259, %v166
        %v314 = vsub.f32 %v262, %v167
        %v315 = vmul.f32 %v309, %v309
        %v316 = vmul.f32 %v310, %v310
        %v317 = vmul.f32 %v311, %v311
        %v318 = vmul.f32 %v312, %v312
        %v319 = vmul.f32 %v313, %v313
        %v320 = vmul.f32 %v314, %v314
        %v321 = vsel %vm307, 1, 0
        %v322 = vsel %vm308, 1, 0
        %v323 = vperm.slane %v321, 0
        %v324 = vperm.slane %v322, 0
        %vm325 = vcmp.eq.s32.totalorder %v323, 1
        %vm326 = vcmp.eq.s32.totalorder %v324, 1
        %v327 = vsel %vm325, %v315, 0.0
        %v328 = vsel %vm326, %v316, 0.0
        %v329 = vsel %vm325, %v317, 0.0
        %v330 = vsel %vm326, %v318, 0.0
        %v331 = vsel %vm325, %v319, 0.0
        %v332 = vsel %vm326, %v320, 0.0
        %v333 = vadd.f32 %v327, %v329
        %v334 = vadd.f32 %v333, %v331
        %v335 = vadd.f32 %v328, %v330
        %v336 = vadd.f32 %v335, %v332
        %v337 = vrot.slane %v334, 4
        %v338 = vadd.f32 %v334, %v337
        %v339 = vrot.slane %v338, 2
        %v340 = vadd.f32 %v338, %v339
        %v341 = vrot.slane %v340, 1
        %v342 = vadd.f32 %v340, %v341
        %v343 = vrot.slane %v336, 4
        %v344 = vadd.f32 %v336, %v343
        %v345 = vrot.slane %v344, 2
        %v346 = vadd.f32 %v344, %v345
        %v347 = vrot.slane %v346, 1
        %v348 = vadd.f32 %v346, %v347
        %v349 = vld [vmem:[%s156] ss:$4 sm:$0x3]
        %v352 = vrot.slane %v243, 7
        %vm353 = vcmask 1040384
        %v354 = vsel %vm353, %v237, %v352
        %v356 = vadd.f32 %v349, %v354
        %v357 = vlaneseq
        %vm358 = vcmp.ge.s32.totalorder %v357, 0
        %vm359 = vcmp.lt.s32.totalorder %v357, 256
        %vm360 = vmand %vm358, %vm359
        %361 = vst.msk [vmem:[%s156] ss:$4 sm:$0x3] %vm360, %v356
        %s362 = scalar_lea.vmem %s156, 2
        %v363 = vld [vmem:[%s362] ss:$4 sm:$0x3]
        %v366 = vrot.slane %v348, 7
        %v367 = vsel %vm353, %v342, %v366
        %v369 = vadd.f32 %v363, %v367
        %370 = vst.msk [vmem:[%s362] ss:$4 sm:$0x3] %vm360, %v369
        %s371 = scalar_lea.vmem %s156, 1
        %v372 = vld [vmem:[%s371] ss:$4 sm:$0x3]
        %v379 = vrot.slane %v162, 7
        %v380 = vrot.slane %v163, 7
        %v381 = vrot.slane %v164, 7
        %v382 = vrot.slane %v165, 7
        %v383 = vrot.slane %v166, 7
        %v384 = vrot.slane %v167, 7
        %v391 = vsub.f32 %v162, %v379
        %v392 = vsub.f32 %v163, %v380
        %v393 = vsub.f32 %v164, %v381
        %v394 = vsub.f32 %v165, %v382
        %v395 = vsub.f32 %v166, %v383
        %v396 = vsub.f32 %v167, %v384
        %v397 = vmul.f32 %v391, %v391
        %v398 = vmul.f32 %v392, %v392
        %v399 = vmul.f32 %v393, %v393
        %v400 = vmul.f32 %v394, %v394
        %v401 = vmul.f32 %v395, %v395
        %v402 = vmul.f32 %v396, %v396
        %vm403 = vcmask 1047553
        %v404 = vsel %vm403, %v397, 0.0
        %v405 = vsel %vm403, %v399, 0.0
        %v406 = vadd.f32 %v404, %v405
        %v407 = vsel %vm403, %v401, 0.0
        %v408 = vadd.f32 %v406, %v407
        %v409 = vsel %vm403, %v398, 0.0
        %v410 = vsel %vm403, %v400, 0.0
        %v411 = vadd.f32 %v409, %v410
        %v412 = vsel %vm403, %v402, 0.0
        %v413 = vadd.f32 %v411, %v412
        %v416 = vrot.slane %v408, 1
        %v417 = vrot.slane %v413, 1
        %vm420 = vcmask 1046528
        %v421 = vsel %vm420, %v416, 0.0
        %v422 = vrot.slane %v421, 4
        %v423 = vadd.f32 %v421, %v422
        %v424 = vrot.slane %v423, 2
        %v425 = vadd.f32 %v423, %v424
        %v426 = vrot.slane %v425, 1
        %v427 = vadd.f32 %v425, %v426
        %v428 = vsel %vm420, %v417, 0.0
        %v429 = vrot.slane %v428, 4
        %v430 = vadd.f32 %v428, %v429
        %v431 = vrot.slane %v430, 2
        %v432 = vadd.f32 %v430, %v431
        %v433 = vrot.slane %v432, 1
        %v434 = vadd.f32 %v432, %v433
        %v437 = vrot.slane %v434, 7
        %v438 = vsel %vm353, %v427, %v437
        %v440 = vadd.f32 %v372, %v438
        %441 = vst.msk [vmem:[%s371] ss:$4 sm:$0x3] %vm360, %v440
        %p442 = scmp.gt.s32.totalorder %s20, 0
        // Predicated region
        $region33: #{tpu_custom_call.1} parent=23 // pred_check
          %p443 = pneg %p442
        $region34: #{tpu_custom_call.1} parent=23 // pred_check_branch
          %445 = sbr.rel (%p443) target = $region36
        $region35: #{tpu_custom_call.1} parent=23 // pred_region
          %v446 = vld [vmem:[%s371] ss:$4 sm:$0x3]
          %v447 = vld [vmem:[#allocation2] sm:$0x3]
          %v448 = vld [vmem:[#allocation2 + $0x2] sm:$0x3]
          %v449 = vld [vmem:[#allocation2 + $0x4] sm:$0x3]
          %v453 = vperm.slane %v447, 0
          %v454 = vperm.slane %v447, 1
          %v455 = vperm.slane %v448, 0
          %v456 = vperm.slane %v448, 1
          %v457 = vperm.slane %v449, 0
          %v458 = vperm.slane %v449, 1
          %v465 = vsub.f32 %v162, %v453
          %v466 = vsub.f32 %v163, %v454
          %v467 = vsub.f32 %v164, %v455
          %v468 = vsub.f32 %v165, %v456
          %v469 = vsub.f32 %v166, %v457
          %v470 = vsub.f32 %v167, %v458
          %v471 = vmul.f32 %v465, %v465
          %v472 = vmul.f32 %v466, %v466
          %v473 = vmul.f32 %v467, %v467
          %v474 = vmul.f32 %v468, %v468
          %v475 = vmul.f32 %v469, %v469
          %v476 = vmul.f32 %v470, %v470
          %v477 = vsel %vm353, %v471, 0.0
          %v478 = vsel %vm353, %v473, 0.0
          %v479 = vadd.f32 %v477, %v478
          %v480 = vsel %vm353, %v475, 0.0
          %v481 = vadd.f32 %v479, %v480
          %v482 = vsel %vm353, %v472, 0.0
          %v483 = vsel %vm353, %v474, 0.0
          %v484 = vadd.f32 %v482, %v483
          %v485 = vsel %vm353, %v476, 0.0
          %v486 = vadd.f32 %v484, %v485
          %v487 = vadd.f32 %v481, 0.0
          %v488 = vadd.f32 %v486, 0.0
          %v491 = vrot.slane %v488, 7
          %v492 = vsel %vm353, %v487, %v491
          %v494 = vadd.f32 %v446, %v492
          %495 = vst.msk [vmem:[%s371] ss:$4 sm:$0x3] %vm360, %v494
        $region36: #{tpu_custom_call.1} parent=23 // pred_fallthru
          _
        %496 = vst [vmem:[#allocation1] sm:$0xff] %v162
        %497 = vst [vmem:[#allocation1 + $0x9] sm:$0xff] %v163
        %s498 = scalar_lea.vmem [#allocation1], 7
        %v499 = vld [vmem:[%s498] ss:$9 sm:$0xff]
        %500 = vst [vmem:[#allocation1] sm:$0xff] %v164
        %501 = vst [vmem:[#allocation1 + $0x9] sm:$0xff] %v165
        %v502 = vld [vmem:[%s498] ss:$9 sm:$0xff]
        %503 = vst [vmem:[#allocation1] sm:$0xff] %v166
        %504 = vst [vmem:[#allocation1 + $0x9] sm:$0xff] %v167
        %v505 = vld [vmem:[%s498] ss:$9 sm:$0xff]
        %509 = vst.msk [vmem:[#allocation2] sm:$0x3] %vm360, %v499
        %510 = vst.msk [vmem:[#allocation2 + $0x2] sm:$0x3] %vm360, %v502
        %511 = vst.msk [vmem:[#allocation2 + $0x4] sm:$0x3] %vm360, %v505
        %p512 = scmp.lt.s32.totalorder %s19, 1
        %s513 = scalar_select %p512, %s19, 1
        %s514 = smul.addr %s513, 2
        %s515 = smul.addr %s514, 4
        %s516 = scalar_lea.vmem %s1, %s515
        // Predicated region
        $region37: #{tpu_custom_call.1} parent=23 // pred_check
          %p517 = pneg %p73
        $region38: #{tpu_custom_call.1} parent=23 // pred_check_branch
          %519 = sbr.rel (%p517) target = $region40
        $region39: #{tpu_custom_call.1} parent=23 // pred_region
          _
        $region40: #{tpu_custom_call.1} parent=23 // pred_fallthru
          _
      $region24: #{tpu_custom_call.1} parent=5 // pred_fallthru
        _
      %p520 = scmp.le.s32.totalorder 2, %s10
      // Predicated region
      $region41: #{tpu_custom_call.1} parent=5 // pred_check
        %p521 = pneg %p520
      $region42: #{tpu_custom_call.1} parent=5 // pred_check_branch
        %523 = sbr.rel (%p521) target = $region44
      $region43: #{tpu_custom_call.1} parent=5 // pred_region
        %s524 = ssub.s32 %s10, 2
        // Predicated region
        $region45: #{tpu_custom_call.1} parent=43 // pred_check
          %p525 = pneg %p79
        $region46: #{tpu_custom_call.1} parent=43 // pred_check_branch
          %527 = sbr.rel (%p525) target = $region48
        $region47: #{tpu_custom_call.1} parent=43 // pred_region
          %p528 = scmp.lt.s32.totalorder %s21, 1
          %s529 = scalar_select %p528, %s21, 1
          %s530 = smul.addr %s529, 2
          %s531 = smul.addr %s530, 4
          %s532 = scalar_lea.vmem %s1, %s531
        $region48: #{tpu_custom_call.1} parent=43 // pred_fallthru
          _
      $region44: #{tpu_custom_call.1} parent=5 // pred_fallthru
        _
    $region6: #{tpu_custom_call.1} parent=1 // loop_footer
      %s14 = sadd.s32 1, %s10
    $region7: #{tpu_custom_call.1} parent=1 // loop_footer_branch
      %9 = sbr.rel target = $region3
    $region8: #{tpu_custom_call.1} parent=1 // loop_exit
      _
    %533 = vsyncpa [#allocation4], 1
    %s534 = scalar_lea.sflag [#allocation4], 1
    %535 = vsyncpa %s534, 1

</llo_original>
